<compile_context>
chip_gen: v6e
topology: v6e:2x2x1
jax: 0.10.0
libtpu: 0.0.40
codegen_flags: <defaults>
</compile_context>

<pallas_src>
import jax
import jax.numpy as jnp
from jax import lax
from jax.experimental import pallas as pl
from jax.experimental.pallas import tpu as pltpu


# --------------------------------------------------------------------------
# Kernel factory
# --------------------------------------------------------------------------
def _make_kernel(accumulate_in_out, tk, k_rem, precision):
    """Build the matmul kernel body.

    accumulate_in_out: accumulate directly into the (f32) output block.
    tk / k_rem: reduction tile size and valid size of the last (ragged) K
                tile; k_rem == 0 means K is tile-exact and no masking happens.
    """
    ragged_k = k_rem != 0

    def _operands(a_ref, b_ref):
        a = a_ref[...]
        b = b_ref[...]
        if ragged_k:
            # Pallas partial edge blocks hold unspecified data out of bounds.
            # Garbage in the K tail would corrupt real outputs, so zero it on
            # the last k step (cheap VPU selects; only emitted for ragged K).
            valid = jnp.where(
                pl.program_id(2) == pl.num_programs(2) - 1, k_rem, tk
            )
            a_ids = lax.broadcasted_iota(jnp.int32, a.shape, 1)
            b_ids = lax.broadcasted_iota(jnp.int32, b.shape, 0)
            a = jnp.where(a_ids < valid, a, 0)
            b = jnp.where(b_ids < valid, b, 0)
        return a, b

    if accumulate_in_out:

        def kernel(a_ref, b_ref, o_ref):
            @pl.when(pl.program_id(2) == 0)
            def _():
                o_ref[...] = jnp.zeros_like(o_ref)

            a, b = _operands(a_ref, b_ref)
            o_ref[...] += jnp.dot(
                a, b, preferred_element_type=jnp.float32, precision=precision
            )

        return kernel

    def kernel(a_ref, b_ref, o_ref, acc_ref):
        @pl.when(pl.program_id(2) == 0)
        def _():
            acc_ref[...] = jnp.zeros_like(acc_ref)

        a, b = _operands(a_ref, b_ref)
        acc_ref[...] += jnp.dot(
            a, b, preferred_element_type=jnp.float32, precision=precision
        )

        @pl.when(pl.program_id(2) == pl.num_programs(2) - 1)
        def _():
            o_ref[...] = acc_ref[...].astype(o_ref.dtype)

    return kernel


# --------------------------------------------------------------------------
# Tiling helpers
# --------------------------------------------------------------------------
def _vmem_capacity_bytes():
    """Per-core VMEM capacity; conservative (v7x) fallback if query fails."""
    try:
        return int(pltpu.get_tpu_info().vmem_capacity_bytes)
    except Exception:
        return 64 << 20


def _choose_tk(K, cap):
    """Reduction tile: exact (== K or dividing K) when possible, ragged else."""
    if K <= cap:
        return K
    top = max(256, (cap // 128) * 128)
    for cand in range(top, 255, -128):
        if K % cand == 0:
            return cand
    return top  # ragged tail; kernel masks the last K tile


def _pick_tiles(M, N, K, a_dsize, b_dsize, out_dsize, budget, needs_scratch,
                vmem_cap):
    """Pick (tm, tn, tk): big output tiles, small reduction tile."""
    is_v7x_like = vmem_cap <= (80 << 20)          # 64 MiB VMEM, 2 TCs/chip
    wide_ok = max(a_dsize, b_dsize) <= 2 and vmem_cap >= (100 << 20)

    tm_cap = 1024
    tn_cap = 2048 if wide_ok else 1024
    tk_cap = 512

    tm = min(tm_cap, M)
    tn = min(tn_cap, N)
    tk = _choose_tk(K, tk_cap)

    def vmem_use(tm, tn, tk):
        # Double-buffered inputs + double-buffered output (+ optional scratch).
        use = 2 * (tm * tk * a_dsize + tk * tn * b_dsize)
        use += 2 * tm * tn * out_dsize
        if needs_scratch:
            use += tm * tn * 4
        return use

    # Shrink the reduction tile first (it buys no arithmetic intensity),
    # then N, then M; keep everything MXU / lane aligned.
    while vmem_use(tm, tn, tk) > budget and tk > 256:
        tk = max(256, ((tk // 2 + 127) // 128) * 128)
    while vmem_use(tm, tn, tk) > budget and tn > 256:
        tn = max(256, ((tn // 2 + 127) // 128) * 128)
    while vmem_use(tm, tn, tk) > budget and tm > 128:
        tm = max(128, ((tm // 2 + 7) // 8) * 8)

    # Only v7x-like parts have two TensorCores to feed: ensure >= 2 parallel
    # (i, j) grid steps by splitting M (keeps N lane-dense / MXU-aligned).
    if is_v7x_like and pl.cdiv(M, tm) * pl.cdiv(N, tn) < 2 and tm >= 16:
        tm = max(8, ((tm // 2 + 7) // 8) * 8)

    return tm, tn, tk


# --------------------------------------------------------------------------
# Public wrapper
# --------------------------------------------------------------------------
def matmul(left, right, *, tm=None, tn=None, tk=None, precision=None):
    """Pallas tiled matmul == torch.matmul(left, right) for 2-D float inputs.

    `precision` is forwarded to the in-kernel dot (e.g. 'highest' for full-f32
    parity with torch at the cost of extra MXU passes).
    """
    assert left.ndim == 2 and right.ndim == 2, "only 2-D matmul implemented"
    M, K = left.shape
    Kb, N = right.shape
    assert K == Kb, f"inner dims must match, got {K} vs {Kb}"

    out_dtype = jnp.result_type(left.dtype, right.dtype)
    assert jnp.issubdtype(out_dtype, jnp.floating), (
        "only floating-point matmul is implemented"
    )

    a_dsize = jnp.dtype(left.dtype).itemsize
    b_dsize = jnp.dtype(right.dtype).itemsize
    out_dsize = jnp.dtype(out_dtype).itemsize
    accumulate_in_out = out_dtype == jnp.dtype(jnp.float32)

    # VMEM budget: ~3/4 of physical capacity, with headroom for Mosaic scratch.
    vmem_cap = _vmem_capacity_bytes()
    vmem_limit = min(100 << 20, (vmem_cap * 3) // 4)
    tile_budget = int(vmem_limit * 0.8)

    if tm is None or tn is None or tk is None:
        atm, atn, atk = _pick_tiles(
            M, N, K, a_dsize, b_dsize, out_dsize, tile_budget,
            needs_scratch=not accumulate_in_out, vmem_cap=vmem_cap,
        )
        tm = tm or atm
        tn = tn or atn
        tk = tk or atk

    # Validate / clamp explicit tiles against the (8, 128) layout constraint.
    assert tm % 8 == 0 or tm >= M, "tm must be a multiple of 8 (or >= M)"
    assert tn % 128 == 0 or tn >= N, "tn must be a multiple of 128 (or >= N)"
    assert tk % 128 == 0 or tk >= K, "tk must be a multiple of 128 (or >= K)"
    tm, tn, tk = min(tm, M), min(tn, N), min(tk, K)

    # Ragged K tail size (0 => exact); M/N edges need no special handling
    # because out-of-bounds output writes are masked by Pallas.
    k_rem = 0 if (tk >= K or K % tk == 0) else K % tk

    gm, gn, gk = pl.cdiv(M, tm), pl.cdiv(N, tn), pl.cdiv(K, tk)
    grid = (gm, gn, gk)

    kernel = _make_kernel(accumulate_in_out, tk, k_rem, precision)
    scratch_shapes = [] if accumulate_in_out else [
        pltpu.VMEM((tm, tn), jnp.float32)
    ]

    # Real HBM traffic of this grid: A re-streamed per j step, B per i step.
    bytes_accessed = (
        gn * (gm * tm) * (gk * tk) * a_dsize
        + gm * (gk * tk) * (gn * tn) * b_dsize
        + (gm * tm) * (gn * tn) * out_dsize
    )

    return pl.pallas_call(
        kernel,
        out_shape=jax.ShapeDtypeStruct((M, N), out_dtype),
        grid_spec=pltpu.PrefetchScalarGridSpec(
            num_scalar_prefetch=0,
            grid=grid,
            in_specs=[
                pl.BlockSpec((tm, tk), lambda i, j, k: (i, k)),
                pl.BlockSpec((tk, tn), lambda i, j, k: (k, j)),
            ],
            out_specs=pl.BlockSpec((tm, tn), lambda i, j, k: (i, j)),
            scratch_shapes=scratch_shapes,
        ),
        compiler_params=pltpu.CompilerParams(
            dimension_semantics=("parallel", "parallel", "arbitrary"),
            vmem_limit_bytes=int(vmem_limit),
        ),
        cost_estimate=pl.CostEstimate(
            flops=2 * M * N * K,
            bytes_accessed=int(bytes_accessed),
            transcendentals=0,
        ),
    )(left, right)


# --------------------------------------------------------------------------
# Self-test
# --------------------------------------------------------------------------
if __name__ == "__main__":
    key = jax.random.PRNGKey(0)
    k1, k2, k3, k4, k5, k6 = jax.random.split(key, 6)

    # 1) Primary small case consistent with the module (seq=8, hidden=32):
    #    full-dim blocks, f32 accumulate-into-output kernel.
    M, K, N = 8, 32, 16
    left = jax.random.normal(k1, (M, K), dtype=jnp.float32)
    right = jax.random.normal(k2, (K, N), dtype=jnp.float32)
    out = jax.block_until_ready(matmul(left, right))
    ref = left @ right
    assert out.shape == (M, N) and out.dtype == jnp.float32
    assert jnp.allclose(out, ref, atol=1e-2, rtol=1e-3), "f32 small mismatch"

    # 2) Ragged everything with explicit small tiles: partial M/N edge blocks
    #    (masked output writes) + in-kernel K-tail masking, f32 path.
    M2, K2, N2 = 200, 300, 136
    left2 = jax.random.normal(k3, (M2, K2), dtype=jnp.float32)
    right2 = jax.random.normal(k4, (K2, N2), dtype=jnp.float32)
    out2 = jax.block_until_ready(matmul(left2, right2, tm=128, tn=128, tk=128))
    ref2 = left2 @ right2
    assert out2.shape == (M2, N2)
    assert jnp.allclose(out2, ref2, atol=5e-2, rtol=1e-2), "f32 ragged mismatch"

    # 3) bf16 inputs / bf16 output with K not divisible by the auto tk:
    #    scratch f32 accumulator kernel + ragged-K masking.
    M3, K3, N3 = 128, 640, 256
    left3 = jax.random.normal(k5, (M3, K3), dtype=jnp.float32).astype(jnp.bfloat16)
    right3 = jax.random.normal(k6, (K3, N3), dtype=jnp.float32).astype(jnp.bfloat16)
    out3 = jax.block_until_ready(matmul(left3, right3))
    ref3 = (left3.astype(jnp.float32) @ right3.astype(jnp.float32)).astype(
        jnp.bfloat16
    )
    assert out3.shape == (M3, N3) and out3.dtype == jnp.bfloat16
    assert jnp.allclose(
        out3.astype(jnp.float32), ref3.astype(jnp.float32), atol=5e-1, rtol=5e-2
    ), "bf16 mismatch"

    print("KERNEL_OK")
</pallas_src>

<mosaic_0001>
module attributes {stable_mosaic.version = 11 : i64} {
  func.func @kernel(%arg0: i32, %arg1: i32, %arg2: i32, %arg3: memref<8x32xf32, #tpu.memory_space<vmem>>, %arg4: memref<32x16xf32, #tpu.memory_space<vmem>>, %arg5: memref<8x16xf32, #tpu.memory_space<vmem>>) attributes {dimension_semantics = [#tpu.dimension_semantics<parallel>, #tpu.dimension_semantics<parallel>, #tpu.dimension_semantics<arbitrary>], iteration_bounds = array<i64: 1, 1, 1>, scalar_prefetch = 0 : i64, scratch_operands = 0 : i64, tpu.core_type = #tpu.core_type<tc>, window_params = [{transform_indices = @transform_0, window_bounds = array<i64: 8, 32>}, {transform_indices = @transform_1, window_bounds = array<i64: 32, 16>}, {transform_indices = @transform_2, window_bounds = array<i64: 8, 16>}]} {
    %c0_i32 = arith.constant 0 : i32
    %0 = arith.cmpi eq, %arg2, %c0_i32 : i32
    %1 = arith.extui %0 : i1 to i32
    %c0_i32_0 = arith.constant 0 : i32
    %2 = arith.cmpi ne, %1, %c0_i32_0 : i32
    scf.if %2 {
      %cst_8 = arith.constant 0.000000e+00 : f32
      %9 = vector.broadcast %cst_8 : f32 to vector<8x16xf32>
      %c0_9 = arith.constant 0 : index
      %c0_10 = arith.constant 0 : index
      %10 = vector.load %arg5[%c0_9, %c0_10] : memref<8x16xf32, #tpu.memory_space<vmem>>, vector<8x16xf32>
      tpu.vector_store %arg5[%c0_9, %c0_10], %9 {strides = array<i32>} : memref<8x16xf32, #tpu.memory_space<vmem>>, vector<8x16xf32>,
    } else {
    }
    %c0 = arith.constant 0 : index
    %c0_1 = arith.constant 0 : index
    %3 = vector.load %arg3[%c0, %c0_1] : memref<8x32xf32, #tpu.memory_space<vmem>>, vector<8x32xf32>
    %c0_2 = arith.constant 0 : index
    %c0_3 = arith.constant 0 : index
    %4 = vector.load %arg4[%c0_2, %c0_3] : memref<32x16xf32, #tpu.memory_space<vmem>>, vector<32x16xf32>
    %c0_4 = arith.constant 0 : index
    %c0_5 = arith.constant 0 : index
    %5 = vector.load %arg5[%c0_4, %c0_5] : memref<8x16xf32, #tpu.memory_space<vmem>>, vector<8x16xf32>
    %cst = arith.constant dense<0.000000e+00> : vector<8x16xf32>
    %6 = tpu.matmul %3, %4, %cst {dimension_numbers = #tpu.dot_dimension_numbers<[1], [0], [0], [1], [0, 0, 1, 1], [], []>} : vector<8x32xf32>, vector<32x16xf32>, vector<8x16xf32> -> vector<8x16xf32>
    %7 = arith.addf %5, %6 : vector<8x16xf32>
    %c0_6 = arith.constant 0 : index
    %c0_7 = arith.constant 0 : index
    %8 = vector.load %arg5[%c0_6, %c0_7] : memref<8x16xf32, #tpu.memory_space<vmem>>, vector<8x16xf32>
    tpu.vector_store %arg5[%c0_6, %c0_7], %7 {strides = array<i32>} : memref<8x16xf32, #tpu.memory_space<vmem>>, vector<8x16xf32>,
    return
  }
  func.func @transform_0(%arg0: i32, %arg1: i32, %arg2: i32) -> (i32, i32) {
    %c0_i32 = arith.constant 0 : i32
    return %arg0, %arg2 : i32, i32
  }
  func.func @transform_1(%arg0: i32, %arg1: i32, %arg2: i32) -> (i32, i32) {
    %c0_i32 = arith.constant 0 : i32
    return %arg2, %arg1 : i32, i32
  }
  func.func @transform_2(%arg0: i32, %arg1: i32, %arg2: i32) -> (i32, i32) {
    %c0_i32 = arith.constant 0 : i32
    return %arg0, %arg1 : i32, i32
  }
}

</mosaic_0001>

<llo_original>
// kernel: tpu_custom_call.1
$region0: #{tpu_custom_call.1}
  #allocation0 [shape = 'u32[]', space=smem, size = 0x4, offset = 0x4, fixed_abs, tag = 'smem constant byte address 0x4 - core index']
  #allocation1 [shape = 'u32[144,128]{1,0:T(1,128)}', space=vmem, size = 0x12000, scoped, tag = 'internal scratch']
  %s0 = inlined_call_operand.vmem [shape: f32[8,32], index: 0, kind: input, shape index: {}]
  %s1 = inlined_call_operand.vmem [shape: f32[32,16], index: 1, kind: input, shape index: {}]
  %s2 = inlined_call_operand.hbm [shape: f32[8,16], index: 2, kind: output, shape index: {}]
  %s3 = sld [smem:[#allocation0]]
  $region22: #{tpu_custom_call.1} parent=0
    _
  %s5 = ssub.s32 1, %s3
  %s6 = scalar_select 0, %s5, %s3
  $region1: #{tpu_custom_call.1} parent=0
    #allocation2 [shape = 'u8[4096]{0}', space=vmem, size = 0x1000, scoped, tag = 'output window, operand 0, single buffered']
    #allocation3 [shape = 's32[1]{0}', space=sflag, size = 0x4, scoped, tag = 'scoped memory for tpu_custom_call.1']
    %7 = vsyncpa [#allocation3], 0
    // Predicated region
    $region2: #{tpu_custom_call.1} parent=1 // pred_check
      _
    $region3: #{tpu_custom_call.1} parent=1 // pred_check_branch
      %9 = sbr.rel (0) target = $region5
    $region4: #{tpu_custom_call.1} parent=1 // pred_region
      _
    $region5: #{tpu_custom_call.1} parent=1 // pred_fallthru
      _
    // Predicated region
    $region6: #{tpu_custom_call.1} parent=1 // pred_check
      _
    $region7: #{tpu_custom_call.1} parent=1 // pred_check_branch
      %11 = sbr.rel (0) target = $region9
    $region8: #{tpu_custom_call.1} parent=1 // pred_region
      _
    $region9: #{tpu_custom_call.1} parent=1 // pred_fallthru
      _
    %p12 = scmp.eq.s32.totalorder 0, 0
    // Predicated region
    $region10: #{tpu_custom_call.1} parent=1 // pred_check
      %p13 = pneg %p12
    $region11: #{tpu_custom_call.1} parent=1 // pred_check_branch
      %15 = sbr.rel (%p13) target = $region13
    $region12: #{tpu_custom_call.1} parent=1 // pred_region
      %vm16 = vcmask 130048
      %17 = vst.msk [vmem:[#allocation2] sm:$0xff] %vm16, 0.0
    $region13: #{tpu_custom_call.1} parent=1 // pred_fallthru
      _
    %v18 = vld [vmem:[%s0] sm:$0xff]
    %v19 = vld [vmem:[%s1] sm:$0xff]
    %v20 = vld [vmem:[%s1 + $0x8] sm:$0xff]
    %v21 = vld [vmem:[%s1 + $0x10] sm:$0xff]
    %v22 = vld [vmem:[%s1 + $0x18] sm:$0xff]
    %v23 = vld [vmem:[#allocation2] sm:$0xff]
    %vm24 = vcmask 261120
    %v26 = vsel %vm24, %v18, 0
    %28 = vmatprep.subr.mxu0 0.0
    %29 = vmatpush1.msra.mxu0 0.0
    %30 = vmatprep.subr.mxu0 0.0
    %31 = vmatpush1.msra.mxu0 0.0
    %32 = vmatprep.subr.mxu0 0.0
    %33 = vmatpush1.msra.mxu0 0.0
    %34 = vmatprep.subr.mxu0 0.0
    %35 = vmatpush1.msra.mxu0 0.0
    %36 = vmatprep.subr.mxu0 0.0
    %37 = vmatpush1.msra.mxu0 0.0
    %38 = vmatprep.subr.mxu0 0.0
    %39 = vmatpush1.msra.mxu0 0.0
    %40 = vmatprep.subr.mxu0 0.0
    %41 = vmatpush1.msra.mxu0 0.0
    %42 = vmatprep.subr.mxu0 0.0
    %43 = vmatpush1.msra.mxu0 0.0
    %44 = vmatprep.subr.mxu0 0.0
    %45 = vmatpush1.msra.mxu0 0.0
    %46 = vmatprep.subr.mxu0 0.0
    %47 = vmatpush1.msra.mxu0 0.0
    %48 = vmatprep.subr.mxu0 0.0
    %49 = vmatpush1.msra.mxu0 0.0
    %50 = vmatprep.subr.mxu0 0.0
    %51 = vmatpush1.msra.mxu0 0.0
    %52 = vmatprep.subr.mxu0 0.0
    %53 = vmatpush1.msra.mxu0 %v22
    %54 = vmatprep.subr.mxu0 0.0
    %55 = vmatpush1.msra.mxu0 %v21
    %56 = vmatprep.subr.mxu0 0.0
    %57 = vmatpush1.msra.mxu0 %v20
    %58 = vmatprep.subr.mxu0 0.0
    %59 = vmatpush1.msra.mxu0 %v19
    %60 = vmatprep.subr.mxu0 0.0
    %61 = vmatpush2.msra.mxu0 0.0
    %62 = vmatprep.subr.mxu0 0.0
    %63 = vmatpush2.msra.mxu0 0.0
    %64 = vmatprep.subr.mxu0 0.0
    %65 = vmatpush2.msra.mxu0 0.0
    %66 = vmatprep.subr.mxu0 0.0
    %67 = vmatpush2.msra.mxu0 0.0
    %68 = vmatprep.subr.mxu0 0.0
    %69 = vmatpush2.msra.mxu0 0.0
    %70 = vmatprep.subr.mxu0 0.0
    %71 = vmatpush2.msra.mxu0 0.0
    %72 = vmatprep.subr.mxu0 0.0
    %73 = vmatpush2.msra.mxu0 0.0
    %74 = vmatprep.subr.mxu0 0.0
    %75 = vmatpush2.msra.mxu0 0.0
    %76 = vmatprep.subr.mxu0 0.0
    %77 = vmatpush2.msra.mxu0 0.0
    %78 = vmatprep.subr.mxu0 0.0
    %79 = vmatpush2.msra.mxu0 0.0
    %80 = vmatprep.subr.mxu0 0.0
    %81 = vmatpush2.msra.mxu0 0.0
    %82 = vmatprep.subr.mxu0 0.0
    %83 = vmatpush2.msra.mxu0 0.0
    %84 = vmatprep.subr.mxu0 0.0
    %85 = vmatpush2.msra.mxu0 0.0
    %86 = vmatprep.subr.mxu0 0.0
    %87 = vmatpush2.msra.mxu0 0.0
    %88 = vmatprep.subr.mxu0 0.0
    %89 = vmatpush2.msra.mxu0 0.0
    %90 = vmatprep.subr.mxu0 0.0
    %91 = vmatpush2.msra.mxu0 0.0
    %92 = vmatprep.mubr.f32.mxu0 0.0
    %93 = vmatmul.mubr.f32.gmra.mxu0 %v26
    %v94 = vpop.f32.mrf.mxu0
    %v95 = vadd.f32 0.0, %v94
    %v96 = vpop.f32.mrf.mxu0
    %97 = vdwg.mxu0
    %v98 = vadd.f32 %v23, %v95
    %vm99 = vcmask 130048
    %100 = vst.msk [vmem:[#allocation2] sm:$0xff] %vm99, %v98
    // Predicated region
    $region14: #{tpu_custom_call.1} parent=1 // pred_check
      _
    $region15: #{tpu_custom_call.1} parent=1 // pred_check_branch
      %102 = sbr.rel (0) target = $region17
    $region16: #{tpu_custom_call.1} parent=1 // pred_region
      %s104 = ssub.s32 128, 128
      %105 = vsyncadd [#allocation3], %s104
      %s107 = sshll.u32 [#allocation2], 4
      %s108 = int_to_ptr.vmem [resolvable:$true] %s107
      %110 = dma.vmem_to_hbm [thread:$0]  %s108, 128, %s2, [#allocation3]
    $region17: #{tpu_custom_call.1} parent=1 // pred_fallthru
      _
    // Predicated region
    $region18: #{tpu_custom_call.1} parent=1 // pred_check
      _
    $region19: #{tpu_custom_call.1} parent=1 // pred_check_branch
      %112 = sbr.rel (0) target = $region21
    $region20: #{tpu_custom_call.1} parent=1 // pred_region
      %113 = dma.done [#allocation3], 128
    $region21: #{tpu_custom_call.1} parent=1 // pred_fallthru
      _
    %114 = vsyncpa [#allocation3], 1

</llo_original>
